<compile_context>
chip_gen: v5e
topology: v5e:2x2
jax: 0.10.0
libtpu: 0.0.40
codegen_flags: <defaults>
</compile_context>

<pallas_src>
import functools

import jax
import jax.numpy as jnp
from jax import lax
from jax.experimental import pallas as pl
from jax.experimental.pallas import tpu as pltpu


def _tcn_kernel(x_ref, xh_ref, w1_ref, b1_ref, w2_ref, b2_ref, o_ref, *,
                kernel_size, dilation, compute_dtype):
    """One (batch, time-block) grid step.

    x_ref  : (1, C_in, t_blk)  current time block, input dtype
    xh_ref : (1, C_in, 128)    right halo view; only the first
                               (kernel_size-1)*dilation columns are read.
    w1_ref : (K, C_mid, C_in)  compute dtype
    b1_ref : (C_mid, 1) f32
    w2_ref : (C_out, C_mid)    compute dtype
    b2_ref : (C_out, 1) f32
    o_ref  : (1, C_out, t_blk) output dtype
    """
    x_blk = x_ref[0]                       # (C_in, t_blk), input dtype
    xh = xh_ref[0]                         # (C_in, 128), input dtype
    mid = (kernel_size - 1) // 2           # pad == mid * dilation for odd K

    h = None
    res = None
    for k in range(kernel_size):
        off = k * dilation
        if off == 0:
            tap = x_blk                    # lane-aligned, no shifted copy
        else:
            # Shifted window column [off, off + t_blk): tail comes from halo.
            tap = jnp.concatenate([x_blk[:, off:], xh[:, :off]], axis=-1)
        if k == mid:
            res = tap                      # bit-exact residual (input dtype)
        part = jnp.dot(w1_ref[k], tap.astype(compute_dtype),
                       preferred_element_type=jnp.float32)
        h = part if h is None else h + part

    h = jnp.maximum(h + b1_ref[...], 0.0)          # bias + ReLU (f32 VPU)
    # dropout (eval mode) -> identity
    out = jnp.dot(w2_ref[...], h.astype(compute_dtype),
                  preferred_element_type=jnp.float32)
    out = jnp.maximum(out + b2_ref[...], 0.0)      # bias + ReLU
    # dropout (eval mode) -> identity
    o_ref[0] = (out + res.astype(jnp.float32)).astype(o_ref.dtype)


def _vmem_estimate(t_blk, c_in, c_mid, c_out, k, in_b, out_b, cd_b):
    """Rough per-step VMEM bytes (double-buffered blocks + in-kernel temps)."""
    io_blocks = (c_in * t_blk + c_in * 128) * in_b + c_out * t_blk * out_b
    weights = (k * c_mid * c_in + c_out * c_mid) * cd_b + (c_mid + c_out) * 4
    temps = (c_in * t_blk * (in_b + k * cd_b)      # residual tap + cast taps
             + c_mid * t_blk * (4 + cd_b)          # h (f32) + h cast
             + c_out * t_blk * 4)                  # out (f32)
    return 2 * (io_blocks + weights) + temps


def _pick_t_blk(t_out, c_in, c_mid, c_out, k, in_b, out_b, cd_b,
                budget_bytes=28 * 1024 * 1024):
    """Largest 128-multiple time tile that fits a v7x-safe VMEM budget."""
    cap = max(128, pl.cdiv(t_out, 128) * 128)
    for cand in (1024, 768, 512, 384, 256, 128):
        if cand <= cap and _vmem_estimate(
                cand, c_in, c_mid, c_out, k, in_b, out_b, cd_b) <= budget_bytes:
            return cand
    return 128


def basic_temporal_block(x_nct, w1, b1, w2, b2, *, kernel_size=3, dilation=3,
                         compute_dtype=jnp.bfloat16, out_dtype=None,
                         t_blk=None):
    """x_nct: (N, C_in, T) as in PyTorch.  Returns (N, C_out, T_out)."""
    n, c_in, t = x_nct.shape
    c_mid = w1.shape[0]
    c_out = w2.shape[0]
    assert w1.shape == (c_mid, c_in, kernel_size), w1.shape
    assert w2.shape == (c_out, c_mid, 1), w2.shape
    assert kernel_size % 2 == 1, "odd kernel_size only (module default is 3)"
    assert c_in == c_out, "residual add requires in_channels == out_channels"
    halo = (kernel_size - 1) * dilation
    t_out = t - halo
    assert t_out > 0
    if out_dtype is None:
        out_dtype = x_nct.dtype

    in_b = jnp.dtype(x_nct.dtype).itemsize
    out_b = jnp.dtype(out_dtype).itemsize
    cd_b = jnp.dtype(compute_dtype).itemsize

    if t_blk is None:
        t_blk = _pick_t_blk(t_out, c_in, c_mid, c_out, kernel_size,
                            in_b, out_b, cd_b)
    assert t_blk % 128 == 0, "time tile must be a multiple of 128 lanes"
    nb = pl.cdiv(t_out, t_blk)
    hb = t_blk // 128                       # halo offset in 128-lane blocks
    # Last 128-block whose start is strictly within T: clamping the halo index
    # to this only triggers when the halo data is provably unused (rem small),
    # so it never changes results but keeps the DMA start in bounds.
    max_halo_blk = (t - 1) // 128

    # PyTorch (C_mid, C_in, K) -> (K, C_mid, C_in); tiny, one-time.
    w1_t = jnp.transpose(w1, (2, 0, 1)).astype(compute_dtype)
    w2_m = w2[:, :, 0].astype(compute_dtype)                 # (C_out, C_mid)
    b1_c = b1.reshape(c_mid, 1).astype(jnp.float32)
    b2_c = b2.reshape(c_out, 1).astype(jnp.float32)

    est = _vmem_estimate(t_blk, c_in, c_mid, c_out, kernel_size,
                         in_b, out_b, cd_b)
    vmem_limit = int(min(40 << 20, max(16 << 20, est * 5 // 4 + (2 << 20))))

    kernel = functools.partial(_tcn_kernel, kernel_size=kernel_size,
                               dilation=dilation, compute_dtype=compute_dtype)

    def halo_idx(b, i):
        return (b, 0, jnp.minimum((i + 1) * hb, max_halo_blk))

    return pl.pallas_call(
        kernel,
        grid=(n, nb),
        in_specs=[
            # Current time block of x (native NCT: T on the 128-lane axis).
            pl.BlockSpec((1, c_in, t_blk), lambda b, i: (b, 0, i)),
            # 128-wide right-halo view of x (x passed twice); only the first
            # (kernel_size-1)*dilation columns are ever read by the taps.
            pl.BlockSpec((1, c_in, 128), halo_idx),
            # Grid-invariant (resident) weights / biases.
            pl.BlockSpec((kernel_size, c_mid, c_in), lambda b, i: (0, 0, 0)),
            pl.BlockSpec((c_mid, 1), lambda b, i: (0, 0)),
            pl.BlockSpec((c_out, c_mid), lambda b, i: (0, 0)),
            pl.BlockSpec((c_out, 1), lambda b, i: (0, 0)),
        ],
        out_specs=pl.BlockSpec((1, c_out, t_blk), lambda b, i: (b, 0, i)),
        out_shape=jax.ShapeDtypeStruct((n, c_out, t_out), out_dtype),
        compiler_params=pltpu.CompilerParams(
            dimension_semantics=("parallel", "parallel"),
            vmem_limit_bytes=vmem_limit),
    )(x_nct, x_nct, w1_t, b1_c, w2_m, b2_c)


def _reference(x_nct, w1, b1, w2, b2, *, kernel_size=3, dilation=3):
    """Pure-JAX f32 reference mirroring the PyTorch forward (eval mode)."""
    pad = (kernel_size - 1) * dilation // 2
    out = lax.conv_general_dilated(
        x_nct, w1, window_strides=(1,), padding='VALID',
        rhs_dilation=(dilation,), dimension_numbers=('NCH', 'OIH', 'NCH'))
    out = jax.nn.relu(out + b1[None, :, None])
    out = lax.conv_general_dilated(
        out, w2, window_strides=(1,), padding='VALID',
        dimension_numbers=('NCH', 'OIH', 'NCH'))
    out = jax.nn.relu(out + b2[None, :, None])
    res = x_nct[:, :, pad:x_nct.shape[2] - pad]
    return out + res


def _make_params(key, c_in, c_mid, c_out, t, n, k):
    ks = jax.random.split(key, 5)
    x = jax.random.normal(ks[0], (n, c_in, t), dtype=jnp.float32)
    w1 = 0.1 * jax.random.normal(ks[1], (c_mid, c_in, k), dtype=jnp.float32)
    b1 = 0.1 * jax.random.normal(ks[2], (c_mid,), dtype=jnp.float32)
    w2 = 0.1 * jax.random.normal(ks[3], (c_out, c_mid, 1), dtype=jnp.float32)
    b2 = 0.1 * jax.random.normal(ks[4], (c_out,), dtype=jnp.float32)
    return x, w1, b1, w2, b2


def _check(x, w1, b1, w2, b2, *, k, d, compute_dtype, atol, rtol, t_blk=None):
    out = jax.block_until_ready(
        basic_temporal_block(x, w1, b1, w2, b2, kernel_size=k, dilation=d,
                             compute_dtype=compute_dtype, t_blk=t_blk))
    ref = jax.block_until_ready(
        _reference(x, w1, b1, w2, b2, kernel_size=k, dilation=d))
    assert out.shape == ref.shape, (out.shape, ref.shape)
    err = float(jnp.max(jnp.abs(out.astype(jnp.float32) - ref)))
    assert jnp.allclose(out.astype(jnp.float32), ref, atol=atol, rtol=rtol), err


if __name__ == "__main__":
    K, DIL = 3, 3
    key = jax.random.PRNGKey(0)
    k1, k2, k3, k4 = jax.random.split(key, 4)

    # Small shapes (single partial time block): N=2, C_in=C_out=8, C_mid=32,
    # T=16 -> T_out=10.
    p_small = _make_params(k1, 8, 32, 8, 16, 2, K)
    _check(*p_small, k=K, d=DIL, compute_dtype=jnp.float32, atol=1e-3, rtol=1e-3)
    _check(*p_small, k=K, d=DIL, compute_dtype=jnp.bfloat16, atol=5e-2, rtol=5e-2)

    # Multi-block path, T_out divisible by the forced tile (halo crosses
    # blocks): T_out = 640 -> 5 time blocks of 128 lanes each.
    p_big = _make_params(k2, 32, 64, 32, 646, 2, K)
    _check(*p_big, k=K, d=DIL, compute_dtype=jnp.float32, atol=1e-3, rtol=1e-3,
           t_blk=128)
    _check(*p_big, k=K, d=DIL, compute_dtype=jnp.bfloat16, atol=5e-2, rtol=5e-2,
           t_blk=128)

    # Ragged last block where the clamped halo index kicks in (halo unused):
    # T_out = 448, t_blk = 256 -> blocks of 256 + 192.
    p_rag = _make_params(k3, 32, 64, 32, 454, 2, K)
    _check(*p_rag, k=K, d=DIL, compute_dtype=jnp.float32, atol=1e-3, rtol=1e-3,
           t_blk=256)

    # Ragged last block where the halo IS needed (rem close to t_blk):
    # T_out = 254, t_blk = 128 -> blocks of 128 + 126.
    p_edge = _make_params(k4, 32, 64, 32, 260, 2, K)
    _check(*p_edge, k=K, d=DIL, compute_dtype=jnp.float32, atol=1e-3, rtol=1e-3,
           t_blk=128)
    _check(*p_edge, k=K, d=DIL, compute_dtype=jnp.bfloat16, atol=5e-2, rtol=5e-2,
           t_blk=128)

    print("KERNEL_OK")
</pallas_src>

<mosaic_0001>
module attributes {stable_mosaic.version = 11 : i64} {
  func.func @_tcn_kernel(%arg0: i32, %arg1: i32, %arg2: memref<1x8x128xf32, #tpu.memory_space<vmem>>, %arg3: memref<1x8x128xf32, #tpu.memory_space<vmem>>, %arg4: memref<3x32x8xf32, #tpu.memory_space<vmem>>, %arg5: memref<32x1xf32, #tpu.memory_space<vmem>>, %arg6: memref<8x32xf32, #tpu.memory_space<vmem>>, %arg7: memref<8x1xf32, #tpu.memory_space<vmem>>, %arg8: memref<1x8x128xf32, #tpu.memory_space<vmem>>) attributes {dimension_semantics = [#tpu.dimension_semantics<parallel>, #tpu.dimension_semantics<parallel>], iteration_bounds = array<i64: 2, 1>, scalar_prefetch = 0 : i64, scratch_operands = 0 : i64, tpu.core_type = #tpu.core_type<tc>, window_params = [{transform_indices = @transform_0, window_bounds = array<i64: 1, 8, 128>}, {transform_indices = @transform_1, window_bounds = array<i64: 1, 8, 128>}, {pipeline_mode = #tpu.pipeline_mode<synchronous>, transform_indices = @transform_2, window_bounds = array<i64: 3, 32, 8>}, {pipeline_mode = #tpu.pipeline_mode<synchronous>, transform_indices = @transform_3, window_bounds = array<i64: 32, 1>}, {pipeline_mode = #tpu.pipeline_mode<synchronous>, transform_indices = @transform_4, window_bounds = array<i64: 8, 32>}, {pipeline_mode = #tpu.pipeline_mode<synchronous>, transform_indices = @transform_5, window_bounds = array<i64: 8, 1>}, {transform_indices = @transform_6, window_bounds = array<i64: 1, 8, 128>}]} {
    %c0 = arith.constant 0 : index
    %c0_0 = arith.constant 0 : index
    %c0_1 = arith.constant 0 : index
    %0 = vector.load %arg2[%c0, %c0_0, %c0_1] : memref<1x8x128xf32, #tpu.memory_space<vmem>>, vector<1x8x128xf32>
    %1 = vector.shape_cast %0 : vector<1x8x128xf32> to vector<8x128xf32>
    %c0_2 = arith.constant 0 : index
    %c0_3 = arith.constant 0 : index
    %c0_4 = arith.constant 0 : index
    %2 = vector.load %arg3[%c0_2, %c0_3, %c0_4] : memref<1x8x128xf32, #tpu.memory_space<vmem>>, vector<1x8x128xf32>
    %3 = vector.shape_cast %2 : vector<1x8x128xf32> to vector<8x128xf32>
    %c0_5 = arith.constant 0 : index
    %c0_6 = arith.constant 0 : index
    %c0_7 = arith.constant 0 : index
    %4 = vector.load %arg4[%c0_5, %c0_6, %c0_7] : memref<3x32x8xf32, #tpu.memory_space<vmem>>, vector<1x32x8xf32>
    %5 = vector.shape_cast %4 : vector<1x32x8xf32> to vector<32x8xf32>
    %cst = arith.constant dense<0.000000e+00> : vector<32x128xf32>
    %6 = tpu.matmul %5, %1, %cst {dimension_numbers = #tpu.dot_dimension_numbers<[1], [0], [0], [1], [0, 0, 1, 1], [], []>} : vector<32x8xf32>, vector<8x128xf32>, vector<32x128xf32> -> vector<32x128xf32>
    %7 = vector.extract_strided_slice %1 {offsets = [0, 3], sizes = [8, 125], strides = [1, 1]} : vector<8x128xf32> to vector<8x125xf32>
    %8 = vector.extract_strided_slice %3 {offsets = [0, 0], sizes = [8, 3], strides = [1, 1]} : vector<8x128xf32> to vector<8x3xf32>
    %9 = tpu.concatenate %7, %8 in 1 : vector<8x125xf32>, vector<8x3xf32> -> vector<8x128xf32>
    %c1 = arith.constant 1 : index
    %c0_8 = arith.constant 0 : index
    %c0_9 = arith.constant 0 : index
    %10 = vector.load %arg4[%c1, %c0_8, %c0_9] : memref<3x32x8xf32, #tpu.memory_space<vmem>>, vector<1x32x8xf32>
    %11 = vector.shape_cast %10 : vector<1x32x8xf32> to vector<32x8xf32>
    %cst_10 = arith.constant dense<0.000000e+00> : vector<32x128xf32>
    %12 = tpu.matmul %11, %9, %cst_10 {dimension_numbers = #tpu.dot_dimension_numbers<[1], [0], [0], [1], [0, 0, 1, 1], [], []>} : vector<32x8xf32>, vector<8x128xf32>, vector<32x128xf32> -> vector<32x128xf32>
    %13 = arith.addf %6, %12 : vector<32x128xf32>
    %14 = vector.extract_strided_slice %1 {offsets = [0, 6], sizes = [8, 122], strides = [1, 1]} : vector<8x128xf32> to vector<8x122xf32>
    %15 = vector.extract_strided_slice %3 {offsets = [0, 0], sizes = [8, 6], strides = [1, 1]} : vector<8x128xf32> to vector<8x6xf32>
    %16 = tpu.concatenate %14, %15 in 1 : vector<8x122xf32>, vector<8x6xf32> -> vector<8x128xf32>
    %c2 = arith.constant 2 : index
    %c0_11 = arith.constant 0 : index
    %c0_12 = arith.constant 0 : index
    %17 = vector.load %arg4[%c2, %c0_11, %c0_12] : memref<3x32x8xf32, #tpu.memory_space<vmem>>, vector<1x32x8xf32>
    %18 = vector.shape_cast %17 : vector<1x32x8xf32> to vector<32x8xf32>
    %cst_13 = arith.constant dense<0.000000e+00> : vector<32x128xf32>
    %19 = tpu.matmul %18, %16, %cst_13 {dimension_numbers = #tpu.dot_dimension_numbers<[1], [0], [0], [1], [0, 0, 1, 1], [], []>} : vector<32x8xf32>, vector<8x128xf32>, vector<32x128xf32> -> vector<32x128xf32>
    %20 = arith.addf %13, %19 : vector<32x128xf32>
    %c0_14 = arith.constant 0 : index
    %c0_15 = arith.constant 0 : index
    %21 = vector.load %arg5[%c0_14, %c0_15] : memref<32x1xf32, #tpu.memory_space<vmem>>, vector<32x1xf32>
    %22 = vector.broadcast %21 : vector<32x1xf32> to vector<32x128xf32>
    %23 = arith.addf %20, %22 : vector<32x128xf32>
    %cst_16 = arith.constant 0.000000e+00 : f32
    %24 = vector.broadcast %cst_16 : f32 to vector<32x128xf32>
    %25 = arith.maximumf %23, %24 : vector<32x128xf32>
    %c0_17 = arith.constant 0 : index
    %c0_18 = arith.constant 0 : index
    %26 = vector.load %arg6[%c0_17, %c0_18] : memref<8x32xf32, #tpu.memory_space<vmem>>, vector<8x32xf32>
    %cst_19 = arith.constant dense<0.000000e+00> : vector<8x128xf32>
    %27 = tpu.matmul %26, %25, %cst_19 {dimension_numbers = #tpu.dot_dimension_numbers<[1], [0], [0], [1], [0, 0, 1, 1], [], []>} : vector<8x32xf32>, vector<32x128xf32>, vector<8x128xf32> -> vector<8x128xf32>
    %c0_20 = arith.constant 0 : index
    %c0_21 = arith.constant 0 : index
    %28 = vector.load %arg7[%c0_20, %c0_21] : memref<8x1xf32, #tpu.memory_space<vmem>>, vector<8x1xf32>
    %29 = vector.broadcast %28 : vector<8x1xf32> to vector<8x128xf32>
    %30 = arith.addf %27, %29 : vector<8x128xf32>
    %cst_22 = arith.constant 0.000000e+00 : f32
    %31 = vector.broadcast %cst_22 : f32 to vector<8x128xf32>
    %32 = arith.maximumf %30, %31 : vector<8x128xf32>
    %33 = arith.addf %32, %9 : vector<8x128xf32>
    %c0_23 = arith.constant 0 : index
    %c0_24 = arith.constant 0 : index
    %c0_25 = arith.constant 0 : index
    %34 = vector.load %arg8[%c0_23, %c0_24, %c0_25] : memref<1x8x128xf32, #tpu.memory_space<vmem>>, vector<1x8x128xf32>
    %35 = vector.shape_cast %34 : vector<1x8x128xf32> to vector<8x128xf32>
    %36 = vector.shape_cast %33 : vector<8x128xf32> to vector<1x8x128xf32>
    tpu.vector_store %arg8[%c0_23, %c0_24, %c0_25], %36 {strides = array<i32>} : memref<1x8x128xf32, #tpu.memory_space<vmem>>, vector<1x8x128xf32>,
    return
  }
  func.func @transform_0(%arg0: i32, %arg1: i32) -> (i32, i32, i32) {
    %c0_i32 = arith.constant 0 : i32
    %c0_i32_0 = arith.constant 0 : i32
    return %arg0, %c0_i32, %arg1 : i32, i32, i32
  }
  func.func @transform_1(%arg0: i32, %arg1: i32) -> (i32, i32, i32) {
    %c1_i32 = arith.constant 1 : i32
    %0 = arith.addi %arg1, %c1_i32 : i32
    %c1_i32_0 = arith.constant 1 : i32
    %1 = arith.muli %0, %c1_i32_0 : i32
    %c0_i32 = arith.constant 0 : i32
    %2 = arith.minsi %1, %c0_i32 : i32
    %c0_i32_1 = arith.constant 0 : i32
    %c0_i32_2 = arith.constant 0 : i32
    return %arg0, %c0_i32_1, %2 : i32, i32, i32
  }
  func.func @transform_2(%arg0: i32, %arg1: i32) -> (i32, i32, i32) {
    %c0_i32 = arith.constant 0 : i32
    %c0_i32_0 = arith.constant 0 : i32
    %c0_i32_1 = arith.constant 0 : i32
    %c0_i32_2 = arith.constant 0 : i32
    return %c0_i32, %c0_i32_0, %c0_i32_1 : i32, i32, i32
  }
  func.func @transform_3(%arg0: i32, %arg1: i32) -> (i32, i32) {
    %c0_i32 = arith.constant 0 : i32
    %c0_i32_0 = arith.constant 0 : i32
    %c0_i32_1 = arith.constant 0 : i32
    return %c0_i32, %c0_i32_0 : i32, i32
  }
  func.func @transform_4(%arg0: i32, %arg1: i32) -> (i32, i32) {
    %c0_i32 = arith.constant 0 : i32
    %c0_i32_0 = arith.constant 0 : i32
    %c0_i32_1 = arith.constant 0 : i32
    return %c0_i32, %c0_i32_0 : i32, i32
  }
  func.func @transform_5(%arg0: i32, %arg1: i32) -> (i32, i32) {
    %c0_i32 = arith.constant 0 : i32
    %c0_i32_0 = arith.constant 0 : i32
    %c0_i32_1 = arith.constant 0 : i32
    return %c0_i32, %c0_i32_0 : i32, i32
  }
  func.func @transform_6(%arg0: i32, %arg1: i32) -> (i32, i32, i32) {
    %c0_i32 = arith.constant 0 : i32
    %c0_i32_0 = arith.constant 0 : i32
    return %arg0, %c0_i32, %arg1 : i32, i32, i32
  }
}

</mosaic_0001>

<llo_original>
// kernel: tpu_custom_call.1
$region0: #{tpu_custom_call.1}
  #allocation0 [shape = 'u32[]', space=smem, size = 0x4, offset = 0x4, fixed_abs, tag = 'smem constant byte address 0x4 - core index']
  #allocation1 [shape = 'u32[72,128]{1,0:T(1,128)}', space=vmem, size = 0x9000, scoped, tag = 'internal scratch']
  %s0 = inlined_call_operand.vmem [shape: f32[2,8,16], index: 0, kind: input, shape index: {}]
  %s1 = inlined_call_operand.vmem [shape: f32[2,8,16], index: 1, kind: input, shape index: {}]
  %s2 = inlined_call_operand.vmem [shape: f32[3,32,8], index: 2, kind: input, shape index: {}]
  %s3 = inlined_call_operand.vmem [shape: f32[32,1], index: 3, kind: input, shape index: {}]
  %s4 = inlined_call_operand.vmem [shape: f32[8,32], index: 4, kind: input, shape index: {}]
  %s5 = inlined_call_operand.vmem [shape: f32[8,1], index: 5, kind: input, shape index: {}]
  %s6 = inlined_call_operand.hbm [shape: f32[2,8,10], index: 6, kind: output, shape index: {}]
  %s7 = sld [smem:[#allocation0]]
  $region57: #{tpu_custom_call.1} parent=0
    _
  %s9 = ssub.s32 1, %s7
  %s10 = scalar_select 0, %s9, %s7
  $region1: #{tpu_custom_call.1} parent=0
    #allocation2 [shape = 'u8[8192]{0}', space=vmem, size = 0x2000, scoped, tag = 'output window, operand 0']
    #allocation3 [shape = 's32[2]{0}', space=sflag, size = 0x8, scoped, tag = 'scoped memory for tpu_custom_call.1']
    %11 = vsyncpa [#allocation3], 0
    %s12 = scalar_lea.sflag [#allocation3], 1
    %13 = vsyncpa %s12, 0
    loop: start=0, step=1, limit=4
    $region2: #{tpu_custom_call.1} parent=1 // loop_pre_header
      _
    $region3: #{tpu_custom_call.1} parent=1 // loop_header
      %s15 = sphi 0, %s19
      %p16 = scmp.ge.s32.totalorder %s15, 4
      %s22 = sphi 0, %s34
      %s23 = sphi 0, %s30
      %s24 = sphi 0, %s22
      %s25 = sphi 0, %s23
      %s26 = sphi 0, %s24
      %s27 = sphi 0, %s25
      %s39 = sphi 0, %s41
      %s42 = sphi 0, %s39
      %s43 = sphi 0, %s42
      %s59 = sphi 0, %s43
      %s73 = sphi 0, %s75
      %s76 = sphi 0, %s73
      %s77 = sphi 0, %s76
      %s93 = sphi 0, %s77
      %s97 = sphi 0, %s97
      %s99 = sphi 0, %s97
      %s100 = sphi 0, %s99
      %s114 = sphi 0, %s100
      %s118 = sphi 0, %s118
      %s120 = sphi 0, %s118
      %s121 = sphi 0, %s120
      %s135 = sphi 0, %s121
      %s139 = sphi 0, %s139
      %s141 = sphi 0, %s139
      %s142 = sphi 0, %s141
      %s156 = sphi 0, %s142
      %s160 = sphi 0, %s160
      %s162 = sphi 0, %s160
      %s163 = sphi 0, %s162
      %s177 = sphi 0, %s163
      %s185 = sphi 0, %s187
      %s188 = sphi 0, %s185
      %s189 = sphi 0, %s188
      %s205 = sphi 0, %s189
    $region4: #{tpu_custom_call.1} parent=1 // loop_header_branch
      %18 = sbr.rel (%p16) target = $region8
    $region5: #{tpu_custom_call.1} parent=1 // loop_body
      %s20 = ssub.s32 %s15, 1
      %s21 = ssub.s32 %s15, 2
      %s28 = sadd.s32 1, %s23
      %p29 = scmp.ge.s32.totalorder %s28, 1
      %s30 = scalar_select %p29, 0, %s28
      %s31 = sadd.s32 1, %s22
      %s32 = scalar_select %p29, %s31, %s22
      %p33 = scmp.ge.s32.totalorder %s32, 2
      %s34 = scalar_select %p33, 0, %s32
      %s35 = ssub.s32 %s22, %s34
      %s36 = ssub.s32 %s23, %s30
      %s37 = sor.u32 %s35, %s36
      %p38 = scmp.eq.s32.totalorder %s37, 0
      %s40 = sadd.s32 %s39, 1
      %s41 = scalar_select %p38, %s39, %s40
      %p44 = pneg %p38
      %p45 = scmp.eq.s32.totalorder %s15, 1
      %p46 = por %p44, %p45
      %p47 = scmp.ne.s32.totalorder %s39, %s42
      %p48 = scmp.eq.s32.totalorder %s15, 0
      %p49 = por %p47, %p48
      %p50 = scmp.ne.s32.totalorder %s39, %s42
      %p51 = scmp.eq.s32.totalorder %s20, 1
      %p52 = por %p50, %p51
      %p53 = scmp.ne.s32.totalorder %s42, %s43
      %p54 = scmp.eq.s32.totalorder %s20, 0
      %p55 = por %p53, %p54
      %p56 = scmp.ne.s32.totalorder %s42, %s43
      %p57 = scmp.eq.s32.totalorder %s21, 1
      %p58 = por %p56, %p57
      %p60 = scmp.ne.s32.totalorder %s43, %s59
      %p61 = scmp.eq.s32.totalorder %s21, 0
      %p62 = por %p60, %p61
      %s63 = sadd.s32 %s23, 1
      %p64 = scmp.lt.s32.totalorder %s63, 0
      %s65 = scalar_select %p64, %s63, 0
      %s66 = sadd.s32 %s30, 1
      %p67 = scmp.lt.s32.totalorder %s66, 0
      %s68 = scalar_select %p67, %s66, 0
      %s69 = ssub.s32 %s22, %s34
      %s70 = ssub.s32 %s65, %s68
      %s71 = sor.u32 %s69, %s70
      %p72 = scmp.eq.s32.totalorder %s71, 0
      %s74 = sadd.s32 %s73, 1
      %s75 = scalar_select %p72, %s73, %s74
      %p78 = pneg %p72
      %p79 = scmp.eq.s32.totalorder %s15, 1
      %p80 = por %p78, %p79
      %p81 = scmp.ne.s32.totalorder %s73, %s76
      %p82 = scmp.eq.s32.totalorder %s15, 0
      %p83 = por %p81, %p82
      %p84 = scmp.ne.s32.totalorder %s73, %s76
      %p85 = scmp.eq.s32.totalorder %s20, 1
      %p86 = por %p84, %p85
      %p87 = scmp.ne.s32.totalorder %s76, %s77
      %p88 = scmp.eq.s32.totalorder %s20, 0
      %p89 = por %p87, %p88
      %p90 = scmp.ne.s32.totalorder %s76, %s77
      %p91 = scmp.eq.s32.totalorder %s21, 1
      %p92 = por %p90, %p91
      %p94 = scmp.ne.s32.totalorder %s77, %s93
      %p95 = scmp.eq.s32.totalorder %s21, 0
      %p96 = por %p94, %p95
      %s98 = sadd.s32 %s97, 1
      %p101 = scmp.eq.s32.totalorder %s15, 1
      %p102 = scmp.ne.s32.totalorder %s97, %s99
      %p103 = scmp.eq.s32.totalorder %s15, 0
      %p104 = por %p102, %p103
      %p105 = scmp.ne.s32.totalorder %s97, %s99
      %p106 = scmp.eq.s32.totalorder %s20, 1
      %p107 = por %p105, %p106
      %p108 = scmp.ne.s32.totalorder %s99, %s100
      %p109 = scmp.eq.s32.totalorder %s20, 0
      %p110 = por %p108, %p109
      %p111 = scmp.ne.s32.totalorder %s99, %s100
      %p112 = scmp.eq.s32.totalorder %s21, 1
      %p113 = por %p111, %p112
      %p115 = scmp.ne.s32.totalorder %s100, %s114
      %p116 = scmp.eq.s32.totalorder %s21, 0
      %p117 = por %p115, %p116
      %s119 = sadd.s32 %s118, 1
      %p122 = scmp.eq.s32.totalorder %s15, 1
      %p123 = scmp.ne.s32.totalorder %s118, %s120
      %p124 = scmp.eq.s32.totalorder %s15, 0
      %p125 = por %p123, %p124
      %p126 = scmp.ne.s32.totalorder %s118, %s120
      %p127 = scmp.eq.s32.totalorder %s20, 1
      %p128 = por %p126, %p127
      %p129 = scmp.ne.s32.totalorder %s120, %s121
      %p130 = scmp.eq.s32.totalorder %s20, 0
      %p131 = por %p129, %p130
      %p132 = scmp.ne.s32.totalorder %s120, %s121
      %p133 = scmp.eq.s32.totalorder %s21, 1
      %p134 = por %p132, %p133
      %p136 = scmp.ne.s32.totalorder %s121, %s135
      %p137 = scmp.eq.s32.totalorder %s21, 0
      %p138 = por %p136, %p137
      %s140 = sadd.s32 %s139, 1
      %p143 = scmp.eq.s32.totalorder %s15, 1
      %p144 = scmp.ne.s32.totalorder %s139, %s141
      %p145 = scmp.eq.s32.totalorder %s15, 0
      %p146 = por %p144, %p145
      %p147 = scmp.ne.s32.totalorder %s139, %s141
      %p148 = scmp.eq.s32.totalorder %s20, 1
      %p149 = por %p147, %p148
      %p150 = scmp.ne.s32.totalorder %s141, %s142
      %p151 = scmp.eq.s32.totalorder %s20, 0
      %p152 = por %p150, %p151
      %p153 = scmp.ne.s32.totalorder %s141, %s142
      %p154 = scmp.eq.s32.totalorder %s21, 1
      %p155 = por %p153, %p154
      %p157 = scmp.ne.s32.totalorder %s142, %s156
      %p158 = scmp.eq.s32.totalorder %s21, 0
      %p159 = por %p157, %p158
      %s161 = sadd.s32 %s160, 1
      %p164 = scmp.eq.s32.totalorder %s15, 1
      %p165 = scmp.ne.s32.totalorder %s160, %s162
      %p166 = scmp.eq.s32.totalorder %s15, 0
      %p167 = por %p165, %p166
      %p168 = scmp.ne.s32.totalorder %s160, %s162
      %p169 = scmp.eq.s32.totalorder %s20, 1
      %p170 = por %p168, %p169
      %p171 = scmp.ne.s32.totalorder %s162, %s163
      %p172 = scmp.eq.s32.totalorder %s20, 0
      %p173 = por %p171, %p172
      %p174 = scmp.ne.s32.totalorder %s162, %s163
      %p175 = scmp.eq.s32.totalorder %s21, 1
      %p176 = por %p174, %p175
      %p178 = scmp.ne.s32.totalorder %s163, %s177
      %p179 = scmp.eq.s32.totalorder %s21, 0
      %p180 = por %p178, %p179
      %s181 = ssub.s32 %s22, %s34
      %s182 = ssub.s32 %s23, %s30
      %s183 = sor.u32 %s181, %s182
      %p184 = scmp.eq.s32.totalorder %s183, 0
      %s186 = sadd.s32 %s185, 1
      %s187 = scalar_select %p184, %s185, %s186
      %p190 = pneg %p184
      %p191 = scmp.eq.s32.totalorder %s15, 1
      %p192 = por %p190, %p191
      %p193 = scmp.ne.s32.totalorder %s185, %s188
      %p194 = scmp.eq.s32.totalorder %s15, 0
      %p195 = por %p193, %p194
      %p196 = scmp.ne.s32.totalorder %s185, %s188
      %p197 = scmp.eq.s32.totalorder %s20, 1
      %p198 = por %p196, %p197
      %p199 = scmp.ne.s32.totalorder %s188, %s189
      %p200 = scmp.eq.s32.totalorder %s20, 0
      %p201 = por %p199, %p200
      %p202 = scmp.ne.s32.totalorder %s188, %s189
      %p203 = scmp.eq.s32.totalorder %s21, 1
      %p204 = por %p202, %p203
      %p206 = scmp.ne.s32.totalorder %s189, %s205
      %p207 = scmp.eq.s32.totalorder %s21, 0
      %p208 = por %p206, %p207
      %p209 = scmp.le.s32.totalorder 1, %s15
      %p210 = scmp.lt.s32.totalorder %s15, 3
      %p211 = pnand %p209, %p210
      %p212 = pneg %p211
      // Predicated region
      $region9: #{tpu_custom_call.1} parent=5 // pred_check
        _
      $region10: #{tpu_custom_call.1} parent=5 // pred_check_branch
        %214 = sbr.rel (%p211) target = $region12
      $region11: #{tpu_custom_call.1} parent=5 // pred_region
        %s215 = ssub.s32 %s15, 1
        // Predicated region
        $region13: #{tpu_custom_call.1} parent=11 // pred_check
          %p216 = pneg %p110
        $region14: #{tpu_custom_call.1} parent=11 // pred_check_branch
          %218 = sbr.rel (%p216) target = $region16
        $region15: #{tpu_custom_call.1} parent=11 // pred_region
          _
        $region16: #{tpu_custom_call.1} parent=11 // pred_fallthru
          _
        // Predicated region
        $region17: #{tpu_custom_call.1} parent=11 // pred_check
          %p219 = pneg %p131
        $region18: #{tpu_custom_call.1} parent=11 // pred_check_branch
          %221 = sbr.rel (%p219) target = $region20
        $region19: #{tpu_custom_call.1} parent=11 // pred_region
          _
        $region20: #{tpu_custom_call.1} parent=11 // pred_fallthru
          _
        // Predicated region
        $region21: #{tpu_custom_call.1} parent=11 // pred_check
          %p222 = pneg %p152
        $region22: #{tpu_custom_call.1} parent=11 // pred_check_branch
          %224 = sbr.rel (%p222) target = $region24
        $region23: #{tpu_custom_call.1} parent=11 // pred_region
          _
        $region24: #{tpu_custom_call.1} parent=11 // pred_fallthru
          _
        // Predicated region
        $region25: #{tpu_custom_call.1} parent=11 // pred_check
          %p225 = pneg %p173
        $region26: #{tpu_custom_call.1} parent=11 // pred_check_branch
          %227 = sbr.rel (%p225) target = $region28
        $region27: #{tpu_custom_call.1} parent=11 // pred_region
          _
        $region28: #{tpu_custom_call.1} parent=11 // pred_fallthru
          _
      $region12: #{tpu_custom_call.1} parent=5 // pred_fallthru
        _
      %p228 = scmp.lt.s32.totalorder %s15, 2
      // Predicated region
      $region29: #{tpu_custom_call.1} parent=5 // pred_check
        %p229 = pneg %p228
      $region30: #{tpu_custom_call.1} parent=5 // pred_check_branch
        %231 = sbr.rel (%p229) target = $region32
      $region31: #{tpu_custom_call.1} parent=5 // pred_region
        // Predicated region
        $region33: #{tpu_custom_call.1} parent=31 // pred_check
          %p232 = pneg %p49
        $region34: #{tpu_custom_call.1} parent=31 // pred_check_branch
          %234 = sbr.rel (%p232) target = $region36
        $region35: #{tpu_custom_call.1} parent=31 // pred_region
          %p235 = scmp.lt.s32.totalorder %s22, 1
          %s236 = scalar_select %p235, %s22, 1
          %p237 = scmp.lt.s32.totalorder %s23, 0
          %s238 = scalar_select %p237, %s23, 0
          %s239 = sadd.s32 %s238, %s236
          %s240 = smul.addr %s239, 8
          %s241 = scalar_lea.vmem %s0, %s240
        $region36: #{tpu_custom_call.1} parent=31 // pred_fallthru
          _
        // Predicated region
        $region37: #{tpu_custom_call.1} parent=31 // pred_check
          %p242 = pneg %p83
        $region38: #{tpu_custom_call.1} parent=31 // pred_check_branch
          %244 = sbr.rel (%p242) target = $region40
        $region39: #{tpu_custom_call.1} parent=31 // pred_region
          %s245 = sadd.s32 %s23, 1
          %p246 = scmp.lt.s32.totalorder %s245, 0
          %s247 = scalar_select %p246, %s245, 0
          %p248 = scmp.lt.s32.totalorder %s22, 1
          %s249 = scalar_select %p248, %s22, 1
          %p250 = scmp.lt.s32.totalorder %s247, 0
          %s251 = scalar_select %p250, %s247, 0
          %s252 = sadd.s32 %s251, %s249
          %s253 = smul.addr %s252, 8
          %s254 = scalar_lea.vmem %s1, %s253
          %s255 = sadd.s32 %s23, 1
          %p256 = scmp.lt.s32.totalorder %s255, 0
          %s257 = scalar_select %p256, %s255, 0
        $region40: #{tpu_custom_call.1} parent=31 // pred_fallthru
          _
      $region32: #{tpu_custom_call.1} parent=5 // pred_fallthru
        _
      %p258 = scmp.le.s32.totalorder 1, %s15
      %p259 = scmp.lt.s32.totalorder %s15, 3
      %p260 = pnand %p258, %p259
      %p261 = pneg %p260
      // Predicated region
      $region41: #{tpu_custom_call.1} parent=5 // pred_check
        _
      $region42: #{tpu_custom_call.1} parent=5 // pred_check_branch
        %263 = sbr.rel (%p260) target = $region44
      $region43: #{tpu_custom_call.1} parent=5 // pred_region
        %s264 = ssub.s32 %s15, 1
        %p265 = scmp.lt.s32.totalorder %s24, 1
        %s266 = scalar_select %p265, %s24, 1
        %p267 = scmp.lt.s32.totalorder %s25, 0
        %s268 = scalar_select %p267, %s25, 0
        %s269 = sadd.s32 %s268, %s266
        %s270 = smul.addr %s269, 8
        %s271 = scalar_lea.vmem %s0, %s270
        %p272 = pneg %p55
        %p273 = pneg %p52
        %s274 = sadd.s32 %s25, 1
        %p275 = scmp.lt.s32.totalorder %s274, 0
        %s276 = scalar_select %p275, %s274, 0
        %p277 = scmp.lt.s32.totalorder %s24, 1
        %s278 = scalar_select %p277, %s24, 1
        %p279 = scmp.lt.s32.totalorder %s276, 0
        %s280 = scalar_select %p279, %s276, 0
        %s281 = sadd.s32 %s280, %s278
        %s282 = smul.addr %s281, 8
        %s283 = scalar_lea.vmem %s1, %s282
        %p284 = pneg %p89
        %p285 = pneg %p86
        %p286 = pneg %p110
        %p287 = pneg %p107
        %p288 = pneg %p131
        %p289 = pneg %p128
        %p290 = pneg %p152
        %p291 = pneg %p149
        %p292 = pneg %p173
        %p293 = pneg %p170
        %p294 = pneg %p201
        %p295 = pneg %p198
        %s296 = sand.u32 %s188, 1
        %s297 = scalar_lea.sflag [#allocation3], %s296
        %s298 = sand.u32 %s188, 1
        %s299 = smul.addr %s298, 8
        %s300 = scalar_lea.vmem [#allocation2], %s299
        %p301 = scmp.lt.s32.totalorder %s24, 1
        %s302 = scalar_select %p301, %s24, 1
        %p303 = scmp.lt.s32.totalorder %s25, 0
        %s304 = scalar_select %p303, %s25, 0
        %s305 = sadd.s32 %s304, %s302
        %s306 = smul.addr %s305, 8
        %s307 = scalar_lea.vmem %s0, %s306
        %s308 = sadd.s32 %s25, 1
        %p309 = scmp.lt.s32.totalorder %s308, 0
        %s310 = scalar_select %p309, %s308, 0
        %p311 = scmp.lt.s32.totalorder %s24, 1
        %s312 = scalar_select %p311, %s24, 1
        %p313 = scmp.lt.s32.totalorder %s310, 0
        %s314 = scalar_select %p313, %s310, 0
        %s315 = sadd.s32 %s314, %s312
        %s316 = smul.addr %s315, 8
        %s317 = scalar_lea.vmem %s1, %s316
        %s318 = sadd.s32 %s25, 1
        %p319 = scmp.lt.s32.totalorder %s318, 0
        %s320 = scalar_select %p319, %s318, 0
        %v321 = vld [vmem:[%s307] sm:$0xff]
        %v322 = vld [vmem:[%s317] sm:$0xff]
        %v323 = vld [vmem:[%s2] sm:$0xff]
        %v324 = vld [vmem:[%s2 + $0x8] sm:$0xff]
        %v325 = vld [vmem:[%s2 + $0x10] sm:$0xff]
        %v326 = vld [vmem:[%s2 + $0x18] sm:$0xff]
        %328 = vrot.lane.b32.xlu0 %v321, 125
        %v329 = vpop.permute.xlu0 %328
        %332 = vrot.lane.b32.xlu0 %v322, 125
        %v333 = vpop.permute.xlu0 %332
        %vm335 = vcmask 1022976
        %v336 = vsel %vm335, %v329, %v333
        %s337 = scalar_lea.vmem %s2, 32
        %v338 = vld [vmem:[%s337] sm:$0xff]
        %v339 = vld [vmem:[%s337 + $0x8] sm:$0xff]
        %v340 = vld [vmem:[%s337 + $0x10] sm:$0xff]
        %v341 = vld [vmem:[%s337 + $0x18] sm:$0xff]
        %vm342 = vcmask 64512
        %v344 = vsel %vm342, %v338, 0
        %v347 = vsel %vm342, %v339, 0
        %v350 = vsel %vm342, %v340, 0
        %v353 = vsel %vm342, %v341, 0
        %355 = vmatpush.msra.mxu0 0.0
        %356 = vmatpush.msra.mxu0 0.0
        %357 = vmatpush.msra.mxu0 0.0
        %358 = vmatpush.msra.mxu0 0.0
        %359 = vmatpush.msra.mxu0 0.0
        %360 = vmatpush.msra.mxu0 0.0
        %361 = vmatpush.msra.mxu0 0.0
        %362 = vmatpush.msra.mxu0 0.0
        %363 = vmatpush.msra.mxu0 0.0
        %364 = vmatpush.msra.mxu0 0.0
        %365 = vmatpush.msra.mxu0 0.0
        %366 = vmatpush.msra.mxu0 0.0
        %367 = vmatpush.msra.mxu0 0.0
        %368 = vmatpush.msra.mxu0 0.0
        %369 = vmatpush.msra.mxu0 0.0
        %370 = vmatpush.msra.mxu0 %v336
        %371 = vmatmul.f32.gmra.mxu0 %v344
        %v372 = vpop.f32.mrf.mxu0
        %v373 = vadd.f32 0.0, %v372
        %374 = vmatmul.f32.gmra.mxu0 %v347
        %v375 = vpop.f32.mrf.mxu0
        %v376 = vadd.f32 0.0, %v375
        %377 = vmatmul.f32.gmra.mxu0 %v350
        %v378 = vpop.f32.mrf.mxu0
        %v379 = vadd.f32 0.0, %v378
        %380 = vmatmul.f32.gmra.mxu0 %v353
        %v381 = vpop.f32.mrf.mxu0
        %v382 = vadd.f32 0.0, %v381
        %383 = vdwg.mxu0
        %v385 = vsel %vm342, %v323, 0
        %v388 = vsel %vm342, %v324, 0
        %v391 = vsel %vm342, %v325, 0
        %v394 = vsel %vm342, %v326, 0
        %396 = vmatpush.msra.mxu0 0.0
        %397 = vmatpush.msra.mxu0 0.0
        %398 = vmatpush.msra.mxu0 0.0
        %399 = vmatpush.msra.mxu0 0.0
        %400 = vmatpush.msra.mxu0 0.0
        %401 = vmatpush.msra.mxu0 0.0
        %402 = vmatpush.msra.mxu0 0.0
        %403 = vmatpush.msra.mxu0 0.0
        %404 = vmatpush.msra.mxu0 0.0
        %405 = vmatpush.msra.mxu0 0.0
        %406 = vmatpush.msra.mxu0 0.0
        %407 = vmatpush.msra.mxu0 0.0
        %408 = vmatpush.msra.mxu0 0.0
        %409 = vmatpush.msra.mxu0 0.0
        %410 = vmatpush.msra.mxu0 0.0
        %411 = vmatpush.msra.mxu0 %v321
        %412 = vmatmul.f32.gmra.mxu0 %v385
        %v413 = vpop.f32.mrf.mxu0
        %v414 = vadd.f32 %v373, %v413
        %415 = vmatmul.f32.gmra.mxu0 %v388
        %v416 = vpop.f32.mrf.mxu0
        %v417 = vadd.f32 %v376, %v416
        %418 = vmatmul.f32.gmra.mxu0 %v391
        %v419 = vpop.f32.mrf.mxu0
        %v420 = vadd.f32 %v379, %v419
        %421 = vmatmul.f32.gmra.mxu0 %v394
        %v422 = vpop.f32.mrf.mxu0
        %v423 = vadd.f32 %v382, %v422
        %424 = vdwg.mxu0
        %425 = vrot.lane.b32.xlu0 %v321, 122
        %v426 = vpop.permute.xlu0 %425
        %428 = vrot.lane.b32.xlu0 %v322, 122
        %v429 = vpop.permute.xlu0 %428
        %vm431 = vcmask 998400
        %v432 = vsel %vm431, %v426, %v429
        %s433 = scalar_lea.vmem %s2, 64
        %v434 = vld [vmem:[%s433] sm:$0xff]
        %v435 = vld [vmem:[%s433 + $0x8] sm:$0xff]
        %v436 = vld [vmem:[%s433 + $0x10] sm:$0xff]
        %v437 = vld [vmem:[%s433 + $0x18] sm:$0xff]
        %v439 = vsel %vm342, %v434, 0
        %v442 = vsel %vm342, %v435, 0
        %v445 = vsel %vm342, %v436, 0
        %v448 = vsel %vm342, %v437, 0
        %450 = vmatpush.msra.mxu0 0.0
        %451 = vmatpush.msra.mxu0 0.0
        %452 = vmatpush.msra.mxu0 0.0
        %453 = vmatpush.msra.mxu0 0.0
        %454 = vmatpush.msra.mxu0 0.0
        %455 = vmatpush.msra.mxu0 0.0
        %456 = vmatpush.msra.mxu0 0.0
        %457 = vmatpush.msra.mxu0 0.0
        %458 = vmatpush.msra.mxu0 0.0
        %459 = vmatpush.msra.mxu0 0.0
        %460 = vmatpush.msra.mxu0 0.0
        %461 = vmatpush.msra.mxu0 0.0
        %462 = vmatpush.msra.mxu0 0.0
        %463 = vmatpush.msra.mxu0 0.0
        %464 = vmatpush.msra.mxu0 0.0
        %465 = vmatpush.msra.mxu0 %v432
        %466 = vmatmul.f32.gmra.mxu0 %v439
        %v467 = vpop.f32.mrf.mxu0
        %v468 = vadd.f32 0.0, %v467
        %469 = vmatmul.f32.gmra.mxu0 %v442
        %v470 = vpop.f32.mrf.mxu0
        %v471 = vadd.f32 0.0, %v470
        %472 = vmatmul.f32.gmra.mxu0 %v445
        %v473 = vpop.f32.mrf.mxu0
        %v474 = vadd.f32 0.0, %v473
        %475 = vmatmul.f32.gmra.mxu0 %v448
        %v476 = vpop.f32.mrf.mxu0
        %v477 = vadd.f32 0.0, %v476
        %478 = vdwg.mxu0
        %v479 = vadd.f32 %v414, %v468
        %v480 = vadd.f32 %v417, %v471
        %v481 = vadd.f32 %v420, %v474
        %v482 = vadd.f32 %v423, %v477
        %v483 = vld [vmem:[%s3] sm:$0xff]
        %v484 = vld [vmem:[%s3 + $0x8] sm:$0xff]
        %v485 = vld [vmem:[%s3 + $0x10] sm:$0xff]
        %v486 = vld [vmem:[%s3 + $0x18] sm:$0xff]
        %488 = vset.pattern.permute.xlu0 0
        %489 = vperm.xlu0 %488, %v483
        %v490 = vpop.permute.xlu0 %489
        %493 = vset.pattern.permute.xlu0 0
        %494 = vperm.xlu0 %493, %v484
        %v495 = vpop.permute.xlu0 %494
        %498 = vset.pattern.permute.xlu0 0
        %499 = vperm.xlu0 %498, %v485
        %v500 = vpop.permute.xlu0 %499
        %503 = vset.pattern.permute.xlu0 0
        %504 = vperm.xlu0 %503, %v486
        %v505 = vpop.permute.xlu0 %504
        %v507 = vadd.f32 %v479, %v490
        %v508 = vadd.f32 %v480, %v495
        %v509 = vadd.f32 %v481, %v500
        %v510 = vadd.f32 %v482, %v505
        %v511 = vmax.f32 %v507, 0.0
        %v512 = vmax.f32 %v508, 0.0
        %v513 = vmax.f32 %v509, 0.0
        %v514 = vmax.f32 %v510, 0.0
        %v515 = vld [vmem:[%s4] sm:$0xff]
        %v516 = vld [vmem:[%s5] sm:$0xff]
        %518 = vset.pattern.permute.xlu0 0
        %519 = vperm.xlu0 %518, %v516
        %v520 = vpop.permute.xlu0 %519
        %vm522 = vcmask 261120
        %v524 = vsel %vm522, %v515, 0
        %526 = vmatpush.msra.mxu0 0.0
        %527 = vmatpush.msra.mxu0 0.0
        %528 = vmatpush.msra.mxu0 0.0
        %529 = vmatpush.msra.mxu0 0.0
        %530 = vmatpush.msra.mxu0 0.0
        %531 = vmatpush.msra.mxu0 0.0
        %532 = vmatpush.msra.mxu0 0.0
        %533 = vmatpush.msra.mxu0 0.0
        %534 = vmatpush.msra.mxu0 0.0
        %535 = vmatpush.msra.mxu0 0.0
        %536 = vmatpush.msra.mxu0 0.0
        %537 = vmatpush.msra.mxu0 0.0
        %538 = vmatpush.msra.mxu0 %v514
        %539 = vmatpush.msra.mxu0 %v513
        %540 = vmatpush.msra.mxu0 %v512
        %541 = vmatpush.msra.mxu0 %v511
        %542 = vmatmul.f32.gmra.mxu0 %v524
        %v543 = vpop.f32.mrf.mxu0
        %v544 = vadd.f32 %v520, %v543
        %545 = vdwg.mxu0
        %v546 = vmax.f32 %v544, 0.0
        %v547 = vadd.f32 %v546, %v336
        %548 = vst [vmem:[%s300] sm:$0xff] %v547
        %s549 = sand.u32 %s188, 1
        %s550 = scalar_lea.sflag [#allocation3], %s549
        %s551 = sand.u32 %s188, 1
        %s552 = smul.addr %s551, 8
        %s553 = scalar_lea.vmem [#allocation2], %s552
        // Predicated region
        $region45: #{tpu_custom_call.1} parent=43 // pred_check
          %p554 = pneg %p198
        $region46: #{tpu_custom_call.1} parent=43 // pred_check_branch
          %556 = sbr.rel (%p554) target = $region48
        $region47: #{tpu_custom_call.1} parent=43 // pred_region
          %558 = vsyncadd %s550, 0
          %s559 = sadd.s32 %s25, %s24
          %s560 = smul.addr %s559, 8
          %s561 = scalar_lea.hbm %s6, %s560
          %s563 = sshll.u32 %s553, 4
          %s564 = int_to_ptr.vmem [resolvable:$true] %s563
          %s565 = sshll.u32 %s561, 4
          %s566 = int_to_ptr.hbm [resolvable:$true] %s565
          %568 = dma.vmem_to_hbm [thread:$0]  %s564, 128, %s566, %s550
        $region48: #{tpu_custom_call.1} parent=43 // pred_fallthru
          _
      $region44: #{tpu_custom_call.1} parent=5 // pred_fallthru
        _
      %p569 = scmp.le.s32.totalorder 2, %s15
      // Predicated region
      $region49: #{tpu_custom_call.1} parent=5 // pred_check
        %p570 = pneg %p569
      $region50: #{tpu_custom_call.1} parent=5 // pred_check_branch
        %572 = sbr.rel (%p570) target = $region52
      $region51: #{tpu_custom_call.1} parent=5 // pred_region
        %s573 = ssub.s32 %s15, 2
        // Predicated region
        $region53: #{tpu_custom_call.1} parent=51 // pred_check
          %p574 = pneg %p204
        $region54: #{tpu_custom_call.1} parent=51 // pred_check_branch
          %576 = sbr.rel (%p574) target = $region56
        $region55: #{tpu_custom_call.1} parent=51 // pred_region
          %s577 = sand.u32 %s189, 1
          %s578 = scalar_lea.sflag [#allocation3], %s577
          %s579 = sand.u32 %s189, 1
          %s580 = smul.addr %s579, 8
          %s581 = scalar_lea.vmem [#allocation2], %s580
          %583 = dma.done %s578, 128
        $region56: #{tpu_custom_call.1} parent=51 // pred_fallthru
          _
      $region52: #{tpu_custom_call.1} parent=5 // pred_fallthru
        _
    $region6: #{tpu_custom_call.1} parent=1 // loop_footer
      %s19 = sadd.s32 1, %s15
    $region7: #{tpu_custom_call.1} parent=1 // loop_footer_branch
      %14 = sbr.rel target = $region3
    $region8: #{tpu_custom_call.1} parent=1 // loop_exit
      _
    %584 = vsyncpa [#allocation3], 1
    %s585 = scalar_lea.sflag [#allocation3], 1
    %586 = vsyncpa %s585, 1

</llo_original>
